<compile_context>
chip_gen: v7x
topology: tpu7x:2x2x1
jax: 0.10.0
libtpu: 0.0.40
codegen_flags: <defaults>
</compile_context>

<pallas_src>
import numpy as np
import jax
import jax.numpy as jnp
from jax.experimental import pallas as pl
from jax.experimental.pallas import tpu as pltpu


# ----------------------------- parameter setup -----------------------------
def make_resample_kernel(k):
    k = np.asarray(k, dtype=np.float32)
    if k.ndim == 1:
        k = np.outer(k, k)
    k = k / k.sum()
    return k


class UpFirDnSmoothParams:
    """Deterministic re-implementation of UpFirDnSmooth.__init__ (no torch)."""

    def __init__(self, resample_kernel, upsample_factor=1, downsample_factor=1,
                 kernel_size=1):
        self.upsample_factor = upsample_factor
        self.downsample_factor = downsample_factor
        self.kernel = make_resample_kernel(resample_kernel)
        if upsample_factor > 1:
            self.kernel = self.kernel * (upsample_factor ** 2)
            pad = self.kernel.shape[0] - upsample_factor - (kernel_size - 1)
            self.pad = ((pad + 1) // 2 + upsample_factor - 1, pad // 2 + 1)
        elif downsample_factor > 1:
            pad = self.kernel.shape[0] - downsample_factor + (kernel_size - 1)
            self.pad = ((pad - 1) // 2, pad // 2)
        else:
            raise NotImplementedError


# ------------------------------ kernel helpers -------------------------------
def _pad_into_scratch(x_ref, pad_ref, *, tc, h, w, hp, wp,
                      p0, p1, c0, h_keep, w_keep, scratch_dtype):
    """Zero only the padding halo, then copy the (possibly cropped) input."""
    if p0 > 0:
        pad_ref[:, 0:p0, :] = jnp.zeros((tc, p0, wp), scratch_dtype)
        pad_ref[:, :, 0:p0] = jnp.zeros((tc, hp, p0), scratch_dtype)
    if p1 > 0:
        pad_ref[:, p0 + h_keep:hp, :] = jnp.zeros((tc, p1, wp), scratch_dtype)
        pad_ref[:, :, p0 + w_keep:wp] = jnp.zeros((tc, hp, p1), scratch_dtype)
    if c0 == 0 and h_keep == h and w_keep == w:
        xin = x_ref[...]
    else:
        xin = x_ref[:, c0:c0 + h_keep, c0:c0 + w_keep]
    pad_ref[:, p0:p0 + h_keep, p0:p0 + w_keep] = xin.astype(scratch_dtype)


def _make_separable_kernel(tc, h, w, hp, wp, ho, wo, p0, p1, c0,
                           h_keep, w_keep, kvf, khf, scratch_dtype):
    """Separable FIR: vertical (sublane-offset) pass first, then horizontal."""
    kh, kw = len(kvf), len(khf)

    def kernel(x_ref, o_ref, pad_ref):
        _pad_into_scratch(x_ref, pad_ref, tc=tc, h=h, w=w, hp=hp, wp=wp,
                          p0=p0, p1=p1, c0=c0, h_keep=h_keep, w_keep=w_keep,
                          scratch_dtype=scratch_dtype)

        # Vertical 1-D FIR along H (taps are Python constants, f32 accumulate).
        v = kvf[0] * pad_ref[:, 0:ho, :].astype(jnp.float32)
        for dy in range(1, kh):
            v = v + kvf[dy] * pad_ref[:, dy:dy + ho, :].astype(jnp.float32)

        # Horizontal 1-D FIR along W on the reduced (tc, ho, wp) intermediate.
        acc = khf[0] * v[:, :, 0:wo]
        for dx in range(1, kw):
            acc = acc + khf[dx] * v[:, :, dx:dx + wo]

        o_ref[...] = acc.astype(o_ref.dtype)

    return kernel


def _make_2d_kernel(tc, h, w, hp, wp, ho, wo, p0, p1, c0,
                    h_keep, w_keep, wf, scratch_dtype):
    """Fallback for a non-separable 2D resample kernel (taps baked in)."""
    kh, kw = len(wf), len(wf[0])

    def kernel(x_ref, o_ref, pad_ref):
        _pad_into_scratch(x_ref, pad_ref, tc=tc, h=h, w=w, hp=hp, wp=wp,
                          p0=p0, p1=p1, c0=c0, h_keep=h_keep, w_keep=w_keep,
                          scratch_dtype=scratch_dtype)
        acc = None
        for dx in range(kw):
            # One lane-offset slice per dx, reused across all dy (sublane) taps.
            col = pad_ref[:, :, dx:dx + wo].astype(jnp.float32)  # (tc, hp, wo)
            for dy in range(kh):
                term = wf[dy][dx] * col[:, dy:dy + ho, :]
                acc = term if acc is None else acc + term
        o_ref[...] = acc.astype(o_ref.dtype)

    return kernel


def _factor_separable(fir):
    """Return (kv, kh) with outer(kv, kh) == fir if fir is rank-1, else None."""
    u, s, vt = np.linalg.svd(fir.astype(np.float64))
    if s.size > 1 and s[1] > 1e-10 * max(s[0], 1e-30):
        return None
    kv = u[:, 0] * np.sqrt(s[0])
    kh = vt[0, :] * np.sqrt(s[0])
    return kv, kh


def _choose_tc(nc, per_chan_bytes, budget, min_steps=4, tc_cap=512):
    """Largest divisor of nc fitting the VMEM budget, preferring >= min_steps
    grid steps (DMA/compute overlap + megacore sharding), then >= 2, then any."""
    divs = [d for d in range(1, nc + 1) if nc % d == 0]
    feas = [d for d in divs if d * per_chan_bytes <= budget] or [1]
    tier1 = [d for d in feas if nc // d >= min_steps and d <= tc_cap]
    if tier1:
        return max(tier1)
    tier2 = [d for d in feas if nc // d >= 2]
    if tier2:
        return max(tier2)
    return max(feas)


# --------------------------------- wrapper ------------------------------------
def upfirdn_smooth(x, fir, pad, *, vmem_budget_bytes=16 << 20):
    """x: (N, C, H, W); fir: (kh, kw) numpy (static); pad: (pad0, pad1). up=down=1."""
    fir = np.asarray(fir, dtype=np.float32)
    n, c, h, w = x.shape
    nc = n * c
    kh, kw = fir.shape
    pad0, pad1 = int(pad[0]), int(pad[1])

    # Static padding geometry (negative pad = crop).
    p0, p1 = max(pad0, 0), max(pad1, 0)
    c0, c1 = max(-pad0, 0), max(-pad1, 0)
    h_keep, w_keep = h - c0 - c1, w - c0 - c1
    hp, wp = h_keep + p0 + p1, w_keep + p0 + p1
    ho, wo = hp - kh + 1, wp - kw + 1
    assert h_keep > 0 and w_keep > 0 and ho > 0 and wo > 0

    # Native NCHW layout: only free leading-dim reshapes, no HBM transposes.
    x_r = x.reshape(nc, h, w)

    itemsize = int(np.dtype(x.dtype).itemsize)
    scratch_dtype = x.dtype  # padded copy in input precision; f32 accumulation

    # VMEM model per channel: double-buffered in/out blocks + single-buffered
    # scratch + f32 vertical intermediate + f32 accumulator.
    per_chan = (2 * h * w * itemsize + 2 * ho * wo * itemsize
                + hp * wp * itemsize + ho * wp * 4 + ho * wo * 4)
    tc = _choose_tc(nc, per_chan, vmem_budget_bytes)
    grid = (nc // tc,)

    # FIR taps baked as Python float constants (flipped: true convolution).
    fac = _factor_separable(fir)
    if fac is not None:
        kv, kho = fac
        kvf = [float(v) for v in kv[::-1]]
        khf = [float(v) for v in kho[::-1]]
        kernel_fn = _make_separable_kernel(tc, h, w, hp, wp, ho, wo, p0, p1,
                                           c0, h_keep, w_keep, kvf, khf,
                                           scratch_dtype)
        flops = 2 * (kh + kw) * ho * wo * nc
    else:
        wf = [[float(fir[kh - 1 - dy, kw - 1 - dx]) for dx in range(kw)]
              for dy in range(kh)]
        kernel_fn = _make_2d_kernel(tc, h, w, hp, wp, ho, wo, p0, p1,
                                    c0, h_keep, w_keep, wf, scratch_dtype)
        flops = 2 * kh * kw * ho * wo * nc

    out_r = pl.pallas_call(
        kernel_fn,
        out_shape=jax.ShapeDtypeStruct((nc, ho, wo), x.dtype),
        grid_spec=pltpu.PrefetchScalarGridSpec(
            num_scalar_prefetch=0,
            grid=grid,
            in_specs=[pl.BlockSpec((tc, h, w), lambda i: (i, 0, 0))],
            out_specs=pl.BlockSpec((tc, ho, wo), lambda i: (i, 0, 0)),
            scratch_shapes=[pltpu.VMEM((tc, hp, wp), scratch_dtype)],
        ),
        compiler_params=pltpu.CompilerParams(
            dimension_semantics=("parallel",),
            vmem_limit_bytes=32 << 20),
        cost_estimate=pl.CostEstimate(
            flops=flops,
            transcendentals=0,
            bytes_accessed=nc * (h * w + ho * wo) * itemsize),
    )(x_r)

    # Free leading-dim reshape back to NCHW.
    return out_r.reshape(n, c, ho, wo)


# ------------------------------ numpy reference ------------------------------
def reference_numpy(x, fir, pad):
    n, c, h, w = x.shape
    kh, kw = fir.shape
    p0, p1 = int(pad[0]), int(pad[1])
    xp = np.pad(x, ((0, 0), (0, 0),
                    (max(p0, 0), max(p1, 0)),
                    (max(p0, 0), max(p1, 0))))
    xp = xp[:, :,
            max(-p0, 0):xp.shape[2] - max(-p1, 0),
            max(-p0, 0):xp.shape[3] - max(-p1, 0)]
    ho = xp.shape[2] - kh + 1
    wo = xp.shape[3] - kw + 1
    out = np.zeros((n, c, ho, wo), np.float32)
    wf = fir[::-1, ::-1]
    for dy in range(kh):
        for dx in range(kw):
            out += xp[:, :, dy:dy + ho, dx:dx + wo] * wf[dy, dx]
    return out


# ----------------------------------- main ------------------------------------
if __name__ == "__main__":
    # Typical StyleGAN2 configuration: smoothing before a stride-2 downsample.
    mod = UpFirDnSmoothParams(resample_kernel=(1, 3, 3, 1),
                              downsample_factor=2, kernel_size=3)

    key = jax.random.PRNGKey(0)
    x = jax.random.normal(key, (2, 4, 16, 16), dtype=jnp.float32)

    out = upfirdn_smooth(x, mod.kernel, mod.pad)
    out = jax.block_until_ready(out)

    ref = reference_numpy(np.asarray(x), mod.kernel, mod.pad)
    assert out.shape == ref.shape, (out.shape, ref.shape)
    np.testing.assert_allclose(np.asarray(out), ref, rtol=1e-5, atol=1e-5)
    print("KERNEL_OK")
</pallas_src>

<mosaic_0001>
module attributes {stable_mosaic.version = 11 : i64} {
  func.func @kernel(%arg0: i32, %arg1: memref<2x16x16xf32, #tpu.memory_space<vmem>>, %arg2: memref<2x16x16xf32, #tpu.memory_space<vmem>>, %arg3: memref<2x19x19xf32, #tpu.memory_space<vmem>>) attributes {dimension_semantics = [#tpu.dimension_semantics<parallel>], iteration_bounds = array<i64: 4>, scalar_prefetch = 0 : i64, scratch_operands = 1 : i64, tpu.core_type = #tpu.core_type<tc>, window_params = [{transform_indices = @transform_0, window_bounds = array<i64: 2, 16, 16>}, {transform_indices = @transform_1, window_bounds = array<i64: 2, 16, 16>}]} {
    %cst = arith.constant 0.000000e+00 : f32
    %0 = vector.broadcast %cst : f32 to vector<2x1x19xf32>
    %c0 = arith.constant 0 : index
    %c0_0 = arith.constant 0 : index
    %c0_1 = arith.constant 0 : index
    %1 = vector.load %arg3[%c0, %c0_0, %c0_1] : memref<2x19x19xf32, #tpu.memory_space<vmem>>, vector<2x1x19xf32>
    tpu.vector_store %arg3[%c0, %c0_0, %c0_1], %0 {strides = array<i32>} : memref<2x19x19xf32, #tpu.memory_space<vmem>>, vector<2x1x19xf32>,
    %cst_2 = arith.constant 0.000000e+00 : f32
    %2 = vector.broadcast %cst_2 : f32 to vector<2x19x1xf32>
    %c0_3 = arith.constant 0 : index
    %c0_4 = arith.constant 0 : index
    %c0_5 = arith.constant 0 : index
    %3 = vector.load %arg3[%c0_3, %c0_4, %c0_5] : memref<2x19x19xf32, #tpu.memory_space<vmem>>, vector<2x19x1xf32>
    tpu.vector_store %arg3[%c0_3, %c0_4, %c0_5], %2 {strides = array<i32>} : memref<2x19x19xf32, #tpu.memory_space<vmem>>, vector<2x19x1xf32>,
    %cst_6 = arith.constant 0.000000e+00 : f32
    %4 = vector.broadcast %cst_6 : f32 to vector<2x2x19xf32>
    %c0_7 = arith.constant 0 : index
    %c17 = arith.constant 17 : index
    %c0_8 = arith.constant 0 : index
    %5 = vector.load %arg3[%c0_7, %c17, %c0_8] : memref<2x19x19xf32, #tpu.memory_space<vmem>>, vector<2x2x19xf32>
    tpu.vector_store %arg3[%c0_7, %c17, %c0_8], %4 {strides = array<i32>} : memref<2x19x19xf32, #tpu.memory_space<vmem>>, vector<2x2x19xf32>,
    %cst_9 = arith.constant 0.000000e+00 : f32
    %6 = vector.broadcast %cst_9 : f32 to vector<2x19x2xf32>
    %c0_10 = arith.constant 0 : index
    %c0_11 = arith.constant 0 : index
    %c17_12 = arith.constant 17 : index
    %7 = vector.load %arg3[%c0_10, %c0_11, %c17_12] : memref<2x19x19xf32, #tpu.memory_space<vmem>>, vector<2x19x2xf32>
    tpu.vector_store %arg3[%c0_10, %c0_11, %c17_12], %6 {strides = array<i32>} : memref<2x19x19xf32, #tpu.memory_space<vmem>>, vector<2x19x2xf32>,
    %c0_13 = arith.constant 0 : index
    %c0_14 = arith.constant 0 : index
    %c0_15 = arith.constant 0 : index
    %8 = vector.load %arg1[%c0_13, %c0_14, %c0_15] : memref<2x16x16xf32, #tpu.memory_space<vmem>>, vector<2x16x16xf32>
    %c0_16 = arith.constant 0 : index
    %c1 = arith.constant 1 : index
    %c1_17 = arith.constant 1 : index
    %9 = vector.load %arg3[%c0_16, %c1, %c1_17] : memref<2x19x19xf32, #tpu.memory_space<vmem>>, vector<2x16x16xf32>
    tpu.vector_store %arg3[%c0_16, %c1, %c1_17], %8 {strides = array<i32>} : memref<2x19x19xf32, #tpu.memory_space<vmem>>, vector<2x16x16xf32>,
    %c0_18 = arith.constant 0 : index
    %c0_19 = arith.constant 0 : index
    %c0_20 = arith.constant 0 : index
    %10 = vector.load %arg3[%c0_18, %c0_19, %c0_20] : memref<2x19x19xf32, #tpu.memory_space<vmem>>, vector<2x16x19xf32>
    %cst_21 = arith.constant -1.250000e-01 : f32
    %11 = vector.broadcast %cst_21 : f32 to vector<2x16x19xf32>
    %12 = arith.mulf %11, %10 : vector<2x16x19xf32>
    %c0_22 = arith.constant 0 : index
    %c1_23 = arith.constant 1 : index
    %c0_24 = arith.constant 0 : index
    %13 = vector.load %arg3[%c0_22, %c1_23, %c0_24] : memref<2x19x19xf32, #tpu.memory_space<vmem>>, vector<2x16x19xf32>
    %cst_25 = arith.constant -3.750000e-01 : f32
    %14 = vector.broadcast %cst_25 : f32 to vector<2x16x19xf32>
    %15 = arith.mulf %14, %13 : vector<2x16x19xf32>
    %16 = arith.addf %12, %15 : vector<2x16x19xf32>
    %c0_26 = arith.constant 0 : index
    %c2 = arith.constant 2 : index
    %c0_27 = arith.constant 0 : index
    %17 = vector.load %arg3[%c0_26, %c2, %c0_27] : memref<2x19x19xf32, #tpu.memory_space<vmem>>, vector<2x16x19xf32>
    %cst_28 = arith.constant -3.750000e-01 : f32
    %18 = vector.broadcast %cst_28 : f32 to vector<2x16x19xf32>
    %19 = arith.mulf %18, %17 : vector<2x16x19xf32>
    %20 = arith.addf %16, %19 : vector<2x16x19xf32>
    %c0_29 = arith.constant 0 : index
    %c3 = arith.constant 3 : index
    %c0_30 = arith.constant 0 : index
    %21 = vector.load %arg3[%c0_29, %c3, %c0_30] : memref<2x19x19xf32, #tpu.memory_space<vmem>>, vector<2x16x19xf32>
    %cst_31 = arith.constant -1.250000e-01 : f32
    %22 = vector.broadcast %cst_31 : f32 to vector<2x16x19xf32>
    %23 = arith.mulf %22, %21 : vector<2x16x19xf32>
    %24 = arith.addf %20, %23 : vector<2x16x19xf32>
    %25 = vector.extract_strided_slice %24 {offsets = [0, 0, 0], sizes = [2, 16, 16], strides = [1, 1, 1]} : vector<2x16x19xf32> to vector<2x16x16xf32>
    %cst_32 = arith.constant -1.250000e-01 : f32
    %26 = vector.broadcast %cst_32 : f32 to vector<2x16x16xf32>
    %27 = arith.mulf %26, %25 : vector<2x16x16xf32>
    %28 = vector.extract_strided_slice %24 {offsets = [0, 0, 1], sizes = [2, 16, 16], strides = [1, 1, 1]} : vector<2x16x19xf32> to vector<2x16x16xf32>
    %cst_33 = arith.constant -3.750000e-01 : f32
    %29 = vector.broadcast %cst_33 : f32 to vector<2x16x16xf32>
    %30 = arith.mulf %29, %28 : vector<2x16x16xf32>
    %31 = arith.addf %27, %30 : vector<2x16x16xf32>
    %32 = vector.extract_strided_slice %24 {offsets = [0, 0, 2], sizes = [2, 16, 16], strides = [1, 1, 1]} : vector<2x16x19xf32> to vector<2x16x16xf32>
    %cst_34 = arith.constant -3.750000e-01 : f32
    %33 = vector.broadcast %cst_34 : f32 to vector<2x16x16xf32>
    %34 = arith.mulf %33, %32 : vector<2x16x16xf32>
    %35 = arith.addf %31, %34 : vector<2x16x16xf32>
    %36 = vector.extract_strided_slice %24 {offsets = [0, 0, 3], sizes = [2, 16, 16], strides = [1, 1, 1]} : vector<2x16x19xf32> to vector<2x16x16xf32>
    %cst_35 = arith.constant -1.250000e-01 : f32
    %37 = vector.broadcast %cst_35 : f32 to vector<2x16x16xf32>
    %38 = arith.mulf %37, %36 : vector<2x16x16xf32>
    %39 = arith.addf %35, %38 : vector<2x16x16xf32>
    %c0_36 = arith.constant 0 : index
    %c0_37 = arith.constant 0 : index
    %c0_38 = arith.constant 0 : index
    %40 = vector.load %arg2[%c0_36, %c0_37, %c0_38] : memref<2x16x16xf32, #tpu.memory_space<vmem>>, vector<2x16x16xf32>
    tpu.vector_store %arg2[%c0_36, %c0_37, %c0_38], %39 {strides = array<i32>} : memref<2x16x16xf32, #tpu.memory_space<vmem>>, vector<2x16x16xf32>,
    return
  }
  func.func @transform_0(%arg0: i32) -> (i32, i32, i32) {
    %c0_i32 = arith.constant 0 : i32
    %c0_i32_0 = arith.constant 0 : i32
    %c0_i32_1 = arith.constant 0 : i32
    return %arg0, %c0_i32, %c0_i32_0 : i32, i32, i32
  }
  func.func @transform_1(%arg0: i32) -> (i32, i32, i32) {
    %c0_i32 = arith.constant 0 : i32
    %c0_i32_0 = arith.constant 0 : i32
    %c0_i32_1 = arith.constant 0 : i32
    return %arg0, %c0_i32, %c0_i32_0 : i32, i32, i32
  }
}

</mosaic_0001>

<llo_original>
// kernel: tpu_custom_call.1
$region0: #{tpu_custom_call.1}
  #allocation0 [shape = 'u32[]', space=smem, size = 0x4, offset = 0x4, fixed_abs, tag = 'smem constant byte address 0x4 - core index']
  #allocation1 [shape = 'u32[144,128]{1,0:T(1,128)}', space=vmem, size = 0x12000, scoped, tag = 'internal scratch']
  #allocation2 [shape = 'f32[2,19,19]{2,1,0:T(8,128)}', space=vmem, size = 0x6000, scoped, tag = 'scratch operand']
  %s0 = inlined_call_operand.hbm [shape: f32[8,16,16], index: 0, kind: input, shape index: {}]
  %s1 = inlined_call_operand.hbm [shape: f32[8,16,16], index: 1, kind: output, shape index: {}]
  %s2 = sld [smem:[#allocation0]]
  $region41: #{tpu_custom_call.1} parent=0
    _
  %s4 = ssub.s32 1, %s2
  %s5 = scalar_select 0, %s4, %s2
  $region1: #{tpu_custom_call.1} parent=0
    #allocation3 [shape = 'u8[32768]{0}', space=vmem, size = 0x8000, scoped, tag = 'input window, operand 0']
    #allocation4 [shape = 's32[2]{0}', space=sflag, size = 0x8, scoped, tag = 'scoped memory for tpu_custom_call.1']
    #allocation5 [shape = 's32[2]{0}', space=sflag, size = 0x8, scoped, tag = 'scoped memory for tpu_custom_call.1']
    #allocation6 [shape = 'u8[32768]{0}', space=vmem, size = 0x8000, scoped, tag = 'output window, operand 0']
    %6 = vsyncpa [#allocation4], 0
    %s7 = scalar_lea.sflag [#allocation4], 1
    %8 = vsyncpa %s7, 0
    %9 = vsyncpa [#allocation5], 0
    %s10 = scalar_lea.sflag [#allocation5], 1
    %11 = vsyncpa %s10, 0
    loop: start=0, step=1, limit=6
    $region2: #{tpu_custom_call.1} parent=1 // loop_pre_header
      _
    $region3: #{tpu_custom_call.1} parent=1 // loop_header
      %s13 = sphi 0, %s17
      %p14 = scmp.ge.s32.totalorder %s13, 6
      %s23 = sphi 0, %s25
      %s26 = sphi 0, %s23
      %s27 = sphi 0, %s26
      %s43 = sphi 0, %s27
      %s49 = sphi 0, %s51
      %s52 = sphi 0, %s49
      %s53 = sphi 0, %s52
      %s69 = sphi 0, %s53
    $region4: #{tpu_custom_call.1} parent=1 // loop_header_branch
      %16 = sbr.rel (%p14) target = $region8
    $region5: #{tpu_custom_call.1} parent=1 // loop_body
      %s18 = ssub.s32 %s13, 1
      %s19 = ssub.s32 %s13, 2
      %s20 = sadd.s32 %s13, 1
      %s21 = ssub.s32 %s13, %s20
      %p22 = scmp.eq.s32.totalorder %s21, 0
      %s24 = sadd.s32 %s23, 1
      %s25 = scalar_select %p22, %s23, %s24
      %p28 = pneg %p22
      %p29 = scmp.eq.s32.totalorder %s13, 3
      %p30 = por %p28, %p29
      %p31 = scmp.ne.s32.totalorder %s23, %s26
      %p32 = scmp.eq.s32.totalorder %s13, 0
      %p33 = por %p31, %p32
      %p34 = scmp.ne.s32.totalorder %s23, %s26
      %p35 = scmp.eq.s32.totalorder %s18, 3
      %p36 = por %p34, %p35
      %p37 = scmp.ne.s32.totalorder %s26, %s27
      %p38 = scmp.eq.s32.totalorder %s18, 0
      %p39 = por %p37, %p38
      %p40 = scmp.ne.s32.totalorder %s26, %s27
      %p41 = scmp.eq.s32.totalorder %s19, 3
      %p42 = por %p40, %p41
      %p44 = scmp.ne.s32.totalorder %s27, %s43
      %p45 = scmp.eq.s32.totalorder %s19, 0
      %p46 = por %p44, %p45
      %s47 = ssub.s32 %s13, %s20
      %p48 = scmp.eq.s32.totalorder %s47, 0
      %s50 = sadd.s32 %s49, 1
      %s51 = scalar_select %p48, %s49, %s50
      %p54 = pneg %p48
      %p55 = scmp.eq.s32.totalorder %s13, 3
      %p56 = por %p54, %p55
      %p57 = scmp.ne.s32.totalorder %s49, %s52
      %p58 = scmp.eq.s32.totalorder %s13, 0
      %p59 = por %p57, %p58
      %p60 = scmp.ne.s32.totalorder %s49, %s52
      %p61 = scmp.eq.s32.totalorder %s18, 3
      %p62 = por %p60, %p61
      %p63 = scmp.ne.s32.totalorder %s52, %s53
      %p64 = scmp.eq.s32.totalorder %s18, 0
      %p65 = por %p63, %p64
      %p66 = scmp.ne.s32.totalorder %s52, %s53
      %p67 = scmp.eq.s32.totalorder %s19, 3
      %p68 = por %p66, %p67
      %p70 = scmp.ne.s32.totalorder %s53, %s69
      %p71 = scmp.eq.s32.totalorder %s19, 0
      %p72 = por %p70, %p71
      %p73 = scmp.le.s32.totalorder 1, %s13
      %p74 = scmp.lt.s32.totalorder %s13, 5
      %p75 = pnand %p73, %p74
      %p76 = pneg %p75
      // Predicated region
      $region9: #{tpu_custom_call.1} parent=5 // pred_check
        _
      $region10: #{tpu_custom_call.1} parent=5 // pred_check_branch
        %78 = sbr.rel (%p75) target = $region12
      $region11: #{tpu_custom_call.1} parent=5 // pred_region
        %s79 = ssub.s32 %s13, 1
      $region12: #{tpu_custom_call.1} parent=5 // pred_fallthru
        _
      %p80 = scmp.lt.s32.totalorder %s13, 4
      // Predicated region
      $region13: #{tpu_custom_call.1} parent=5 // pred_check
        %p81 = pneg %p80
      $region14: #{tpu_custom_call.1} parent=5 // pred_check_branch
        %83 = sbr.rel (%p81) target = $region16
      $region15: #{tpu_custom_call.1} parent=5 // pred_region
        // Predicated region
        $region17: #{tpu_custom_call.1} parent=15 // pred_check
          %p84 = pneg %p33
        $region18: #{tpu_custom_call.1} parent=15 // pred_check_branch
          %86 = sbr.rel (%p84) target = $region20
        $region19: #{tpu_custom_call.1} parent=15 // pred_region
          %s87 = sand.u32 %s23, 1
          %s88 = scalar_lea.sflag [#allocation4], %s87
          %s89 = sand.u32 %s23, 1
          %s90 = smul.addr %s89, 32
          %s91 = scalar_lea.vmem [#allocation3], %s90
          %s92 = smul.u32 2, %s13
          %s94 = ssub.s32 512, 512
          %95 = vsyncadd %s88, %s94
          %s96 = smul.addr %s92, 2
          %s97 = smul.addr %s96, 128
          %s98 = scalar_lea.hbm %s0, %s97
          %s99 = sshll.u32 %s91, 4
          %s100 = int_to_ptr.vmem [resolvable:$true] %s99
          %105 = dma.hbm_to_vmem [thread:$0]  %s98, 512, %s100, %s88, 128, 128, 8
        $region20: #{tpu_custom_call.1} parent=15 // pred_fallthru
          _
      $region16: #{tpu_custom_call.1} parent=5 // pred_fallthru
        _
      %p106 = scmp.le.s32.totalorder 1, %s13
      %p107 = scmp.lt.s32.totalorder %s13, 5
      %p108 = pnand %p106, %p107
      %p109 = pneg %p108
      // Predicated region
      $region21: #{tpu_custom_call.1} parent=5 // pred_check
        _
      $region22: #{tpu_custom_call.1} parent=5 // pred_check_branch
        %111 = sbr.rel (%p108) target = $region24
      $region23: #{tpu_custom_call.1} parent=5 // pred_region
        %s112 = ssub.s32 %s13, 1
        %s113 = sand.u32 %s26, 1
        %s114 = scalar_lea.sflag [#allocation4], %s113
        %s115 = sand.u32 %s26, 1
        %s116 = smul.addr %s115, 32
        %s117 = scalar_lea.vmem [#allocation3], %s116
        // Predicated region
        $region25: #{tpu_custom_call.1} parent=23 // pred_check
          %p118 = pneg %p39
        $region26: #{tpu_custom_call.1} parent=23 // pred_check_branch
          %120 = sbr.rel (%p118) target = $region28
        $region27: #{tpu_custom_call.1} parent=23 // pred_region
          %121 = dma.done %s114, 512
        $region28: #{tpu_custom_call.1} parent=23 // pred_fallthru
          _
        %s122 = sand.u32 %s26, 1
        %s123 = scalar_lea.sflag [#allocation4], %s122
        %s124 = sand.u32 %s26, 1
        %s125 = smul.addr %s124, 32
        %s126 = scalar_lea.vmem [#allocation3], %s125
        %p127 = pneg %p39
        %p128 = pneg %p36
        %p129 = pneg %p65
        %p130 = pneg %p62
        %s131 = sand.u32 %s52, 1
        %s132 = scalar_lea.sflag [#allocation5], %s131
        %s133 = sand.u32 %s52, 1
        %s134 = smul.addr %s133, 32
        %s135 = scalar_lea.vmem [#allocation6], %s134
        %s136 = smul.u32 2, %s18
        %s137 = smul.u32 2, %s18
        %vm138 = vcmask 147456
        %139 = vst.msk [vmem:[#allocation2] sm:$0x1] %vm138, 0.0
        %140 = vst.msk [vmem:[#allocation2 + $0x18] sm:$0x1] %vm138, 0.0
        %vm141 = vcmask 7168
        %142 = vst.msk [vmem:[#allocation2] sm:$0xff] %vm141, 0.0
        %143 = vst.msk [vmem:[#allocation2 + $0x8] sm:$0xff] %vm141, 0.0
        %vm144 = vcmask 2048
        %145 = vst.msk [vmem:[#allocation2 + $0x10] sm:$0x7] %vm144, 0.0
        %146 = vst.msk [vmem:[#allocation2 + $0x18] sm:$0xff] %vm141, 0.0
        %147 = vst.msk [vmem:[#allocation2 + $0x20] sm:$0xff] %vm141, 0.0
        %148 = vst.msk [vmem:[#allocation2 + $0x28] sm:$0x7] %vm144, 0.0
        %vm149 = vcmask 148480
        %150 = vst.msk [vmem:[#allocation2 + $0x11] sm:$0x3] %vm149, 0.0
        %151 = vst.msk [vmem:[#allocation2 + $0x29] sm:$0x3] %vm149, 0.0
        %vm152 = vcmask 154760
        %153 = vst.msk [vmem:[#allocation2] sm:$0xff] %vm152, 0.0
        %154 = vst.msk [vmem:[#allocation2 + $0x8] sm:$0xff] %vm152, 0.0
        %vm155 = vcmask 149640
        %156 = vst.msk [vmem:[#allocation2 + $0x10] sm:$0x7] %vm155, 0.0
        %157 = vst.msk [vmem:[#allocation2 + $0x18] sm:$0xff] %vm152, 0.0
        %158 = vst.msk [vmem:[#allocation2 + $0x20] sm:$0xff] %vm152, 0.0
        %159 = vst.msk [vmem:[#allocation2 + $0x28] sm:$0x7] %vm155, 0.0
        %v160 = vld [vmem:[%s117] sm:$0xff]
        %v161 = vld [vmem:[%s117 + $0x8] sm:$0xff]
        %v162 = vld [vmem:[%s117 + $0x10] sm:$0xff]
        %v163 = vld [vmem:[%s117 + $0x18] sm:$0xff]
        %168 = vrot.lane.b32.xlu0 %v160, 1
        %v169 = vpop.permute.xlu0 %168
        %170 = vrot.lane.b32.xlu0 %v161, 1
        %v171 = vpop.permute.xlu0 %170
        %172 = vrot.lane.b32.xlu0 %v162, 1
        %v173 = vpop.permute.xlu0 %172
        %174 = vrot.lane.b32.xlu0 %v163, 1
        %v175 = vpop.permute.xlu0 %174
        %vm180 = vcmask 138248
        %181 = vst.msk [vmem:[#allocation2 + $0x1] sm:$0xff] %vm180, %v169
        %182 = vst.msk [vmem:[#allocation2 + $0x9] sm:$0xff] %vm180, %v171
        %183 = vst.msk [vmem:[#allocation2 + $0x19] sm:$0xff] %vm180, %v173
        %184 = vst.msk [vmem:[#allocation2 + $0x21] sm:$0xff] %vm180, %v175
        %v185 = vld [vmem:[#allocation2] sm:$0xff]
        %v186 = vld [vmem:[#allocation2 + $0x8] sm:$0xff]
        %v187 = vld [vmem:[#allocation2 + $0x18] sm:$0xff]
        %v188 = vld [vmem:[#allocation2 + $0x20] sm:$0xff]
        %v189 = vmul.f32 %v185, -0.125
        %v190 = vmul.f32 %v186, -0.125
        %v191 = vmul.f32 %v187, -0.125
        %v192 = vmul.f32 %v188, -0.125
        %v193 = vld [vmem:[#allocation2 + $0x1] sm:$0xff]
        %v194 = vld [vmem:[#allocation2 + $0x9] sm:$0xff]
        %v195 = vld [vmem:[#allocation2 + $0x19] sm:$0xff]
        %v196 = vld [vmem:[#allocation2 + $0x21] sm:$0xff]
        %v197 = vmul.f32 %v193, -0.375
        %v198 = vmul.f32 %v194, -0.375
        %v199 = vmul.f32 %v195, -0.375
        %v200 = vmul.f32 %v196, -0.375
        %v201 = vadd.f32 %v189, %v197
        %v202 = vadd.f32 %v190, %v198
        %v203 = vadd.f32 %v191, %v199
        %v204 = vadd.f32 %v192, %v200
        %v205 = vld [vmem:[#allocation2 + $0x2] sm:$0xff]
        %v206 = vld [vmem:[#allocation2 + $0xa] sm:$0xff]
        %v207 = vld [vmem:[#allocation2 + $0x1a] sm:$0xff]
        %v208 = vld [vmem:[#allocation2 + $0x22] sm:$0xff]
        %v209 = vmul.f32 %v205, -0.375
        %v210 = vmul.f32 %v206, -0.375
        %v211 = vmul.f32 %v207, -0.375
        %v212 = vmul.f32 %v208, -0.375
        %v213 = vadd.f32 %v201, %v209
        %v214 = vadd.f32 %v202, %v210
        %v215 = vadd.f32 %v203, %v211
        %v216 = vadd.f32 %v204, %v212
        %v217 = vld [vmem:[#allocation2 + $0x3] sm:$0xff]
        %v218 = vld [vmem:[#allocation2 + $0xb] sm:$0xff]
        %v219 = vld [vmem:[#allocation2 + $0x1b] sm:$0xff]
        %v220 = vld [vmem:[#allocation2 + $0x23] sm:$0xff]
        %v221 = vmul.f32 %v217, -0.125
        %v222 = vmul.f32 %v218, -0.125
        %v223 = vmul.f32 %v219, -0.125
        %v224 = vmul.f32 %v220, -0.125
        %v225 = vadd.f32 %v213, %v221
        %v226 = vadd.f32 %v214, %v222
        %v227 = vadd.f32 %v215, %v223
        %v228 = vadd.f32 %v216, %v224
        %v229 = vmul.f32 %v225, -0.125
        %v230 = vmul.f32 %v226, -0.125
        %v231 = vmul.f32 %v227, -0.125
        %v232 = vmul.f32 %v228, -0.125
        %v233 = vmul.f32 %v225, -0.375
        %v234 = vmul.f32 %v226, -0.375
        %v235 = vmul.f32 %v227, -0.375
        %v236 = vmul.f32 %v228, -0.375
        %241 = vrot.lane.b32.xlu0 %v233, 127
        %v242 = vpop.permute.xlu0 %241
        %243 = vrot.lane.b32.xlu0 %v234, 127
        %v244 = vpop.permute.xlu0 %243
        %245 = vrot.lane.b32.xlu0 %v235, 127
        %v246 = vpop.permute.xlu0 %245
        %247 = vrot.lane.b32.xlu0 %v236, 127
        %v248 = vpop.permute.xlu0 %247
        %v253 = vadd.f32 %v229, %v242
        %v254 = vadd.f32 %v230, %v244
        %v255 = vadd.f32 %v231, %v246
        %v256 = vadd.f32 %v232, %v248
        %257 = vrot.lane.b32.xlu0 %v233, 126
        %v258 = vpop.permute.xlu0 %257
        %259 = vrot.lane.b32.xlu0 %v234, 126
        %v260 = vpop.permute.xlu0 %259
        %261 = vrot.lane.b32.xlu0 %v235, 126
        %v262 = vpop.permute.xlu0 %261
        %263 = vrot.lane.b32.xlu0 %v236, 126
        %v264 = vpop.permute.xlu0 %263
        %v269 = vadd.f32 %v253, %v258
        %v270 = vadd.f32 %v254, %v260
        %v271 = vadd.f32 %v255, %v262
        %v272 = vadd.f32 %v256, %v264
        %277 = vrot.lane.b32.xlu0 %v229, 125
        %v278 = vpop.permute.xlu0 %277
        %279 = vrot.lane.b32.xlu0 %v230, 125
        %v280 = vpop.permute.xlu0 %279
        %281 = vrot.lane.b32.xlu0 %v231, 125
        %v282 = vpop.permute.xlu0 %281
        %283 = vrot.lane.b32.xlu0 %v232, 125
        %v284 = vpop.permute.xlu0 %283
        %v289 = vadd.f32 %v269, %v278
        %v290 = vadd.f32 %v270, %v280
        %v291 = vadd.f32 %v271, %v282
        %v292 = vadd.f32 %v272, %v284
        %vm293 = vcmask 130048
        %294 = vst.msk [vmem:[%s135] sm:$0xff] %vm293, %v289
        %295 = vst.msk [vmem:[%s135 + $0x8] sm:$0xff] %vm293, %v290
        %296 = vst.msk [vmem:[%s135 + $0x10] sm:$0xff] %vm293, %v291
        %297 = vst.msk [vmem:[%s135 + $0x18] sm:$0xff] %vm293, %v292
        %s298 = sand.u32 %s52, 1
        %s299 = scalar_lea.sflag [#allocation5], %s298
        %s300 = sand.u32 %s52, 1
        %s301 = smul.addr %s300, 32
        %s302 = scalar_lea.vmem [#allocation6], %s301
        // Predicated region
        $region29: #{tpu_custom_call.1} parent=23 // pred_check
          %p303 = pneg %p62
        $region30: #{tpu_custom_call.1} parent=23 // pred_check_branch
          %305 = sbr.rel (%p303) target = $region32
        $region31: #{tpu_custom_call.1} parent=23 // pred_region
          %s306 = smul.u32 2, %s18
          %s308 = ssub.s32 512, 512
          %309 = vsyncadd %s299, %s308
          %s310 = smul.addr %s306, 2
          %s311 = smul.addr %s310, 128
          %s312 = scalar_lea.hbm %s1, %s311
          %s313 = sshll.u32 %s302, 4
          %s314 = int_to_ptr.vmem [resolvable:$true] %s313
          %319 = dma.vmem_to_hbm [thread:$0]  %s314, 512, %s312, %s299, 128, 128, 8
        $region32: #{tpu_custom_call.1} parent=23 // pred_fallthru
          _
      $region24: #{tpu_custom_call.1} parent=5 // pred_fallthru
        _
      %p320 = scmp.le.s32.totalorder 2, %s13
      // Predicated region
      $region33: #{tpu_custom_call.1} parent=5 // pred_check
        %p321 = pneg %p320
      $region34: #{tpu_custom_call.1} parent=5 // pred_check_branch
        %323 = sbr.rel (%p321) target = $region36
      $region35: #{tpu_custom_call.1} parent=5 // pred_region
        %s324 = ssub.s32 %s13, 2
        // Predicated region
        $region37: #{tpu_custom_call.1} parent=35 // pred_check
          %p325 = pneg %p68
        $region38: #{tpu_custom_call.1} parent=35 // pred_check_branch
          %327 = sbr.rel (%p325) target = $region40
        $region39: #{tpu_custom_call.1} parent=35 // pred_region
          %s328 = sand.u32 %s53, 1
          %s329 = scalar_lea.sflag [#allocation5], %s328
          %s330 = sand.u32 %s53, 1
          %s331 = smul.addr %s330, 32
          %s332 = scalar_lea.vmem [#allocation6], %s331
          %333 = dma.done %s329, 512
        $region40: #{tpu_custom_call.1} parent=35 // pred_fallthru
          _
      $region36: #{tpu_custom_call.1} parent=5 // pred_fallthru
        _
    $region6: #{tpu_custom_call.1} parent=1 // loop_footer
      %s17 = sadd.s32 1, %s13
    $region7: #{tpu_custom_call.1} parent=1 // loop_footer_branch
      %12 = sbr.rel target = $region3
    $region8: #{tpu_custom_call.1} parent=1 // loop_exit
      _
    %334 = vsyncpa [#allocation4], 1
    %s335 = scalar_lea.sflag [#allocation4], 1
    %336 = vsyncpa %s335, 1
    %337 = vsyncpa [#allocation5], 1
    %s338 = scalar_lea.sflag [#allocation5], 1
    %339 = vsyncpa %s338, 1

</llo_original>
